<compile_context>
chip_gen: v7x
topology: tpu7x:2x2x1
jax: 0.10.0
libtpu: 0.0.40
codegen_flags: <defaults>
</compile_context>

<pallas_src>
import jax
import jax.numpy as jnp
from jax.experimental import pallas as pl
from jax.experimental.pallas import tpu as pltpu

NEG_SLOPE = 0.01     # nn.LeakyReLU default negative_slope
OUT_FEATURES = 3
OUT_PAD = 128        # lane-dense padded output width (store is unmasked vst)


def _leaky_relu(x):
    return jnp.where(x > 0, x, NEG_SLOPE * x)


def _round_up(x, m):
    return (x + m - 1) // m * m


# --------------------------------------------------------------------------
# Kernel
# --------------------------------------------------------------------------
def pair_compare_kernel(left_ref, right_ref,
                        w1_ref, b1l_ref, b1r_ref,
                        w2_ref, b2_ref,
                        w3_ref, b3_ref,
                        out_ref):
    """3-layer MLP + pairwise subtraction for one batch tile (all in VMEM)."""
    tb = left_ref.shape[0]

    # Fused layer-1: one [2*TB, D] @ [D, H] matmul instead of two.
    stacked = jnp.concatenate([left_ref[...], right_ref[...]], axis=0)
    hid = jnp.dot(stacked, w1_ref[...], preferred_element_type=jnp.float32)

    # Position column folded into the biases (pos=0 -> b1l, pos=1 -> b1r).
    hid_left = _leaky_relu(hid[:tb] + b1l_ref[...])
    hid_right = _leaky_relu(hid[tb:] + b1r_ref[...])
    diff = hid_left - hid_right                                    # f32

    h2 = _leaky_relu(
        jnp.dot(diff.astype(w2_ref.dtype), w2_ref[...],
                preferred_element_type=jnp.float32) + b2_ref[...])

    out = jnp.dot(h2.astype(w3_ref.dtype), w3_ref[...],
                  preferred_element_type=jnp.float32) + b3_ref[...]  # [TB, 128]
    out_ref[...] = out.astype(out_ref.dtype)


# --------------------------------------------------------------------------
# Parameter init (mimics torch.nn.Linear uniform +/- 1/sqrt(fan_in))
# --------------------------------------------------------------------------
def init_linear(key, in_f, out_f):
    kw, kb = jax.random.split(key)
    bound = 1.0 / jnp.sqrt(jnp.float32(in_f))
    w = jax.random.uniform(kw, (in_f, out_f), jnp.float32, -bound, bound)
    b = jax.random.uniform(kb, (1, out_f), jnp.float32, -bound, bound)
    return w, b


def init_pair_compare_params(key, in_feature, hid_units):
    k1, k2, k3 = jax.random.split(key, 3)
    w1, b1 = init_linear(k1, in_feature + 1, hid_units)          # out_mlp1
    w2, b2 = init_linear(k2, hid_units, hid_units // 2)          # out_mlp2
    w3, b3 = init_linear(k3, hid_units // 2, OUT_FEATURES)       # out_mlp3
    return dict(w1=w1, b1=b1, w2=w2, b2=b2, w3=w3, b3=b3)


def _prepare_kernel_params(params, compute_dtype):
    """Fold the pos column into biases, pad layer-3 to a lane-dense width."""
    w1 = params["w1"]                      # [D+1, H]
    b1 = params["b1"]                      # [1, H]
    d = w1.shape[0] - 1
    w1_main = w1[:d].astype(compute_dtype)            # [D, H]
    b1_left = b1.astype(jnp.float32)                   # pos = 0
    b1_right = (b1 + w1[d:d + 1]).astype(jnp.float32)  # pos = 1  (exact fold)

    w2 = params["w2"].astype(compute_dtype)
    b2 = params["b2"].astype(jnp.float32)

    w3, b3 = params["w3"], params["b3"]                # [H//2, 3], [1, 3]
    hh = w3.shape[0]
    w3_pad = jnp.zeros((hh, OUT_PAD), jnp.float32).at[:, :OUT_FEATURES].set(w3)
    w3_pad = w3_pad.astype(compute_dtype)
    b3_pad = jnp.zeros((1, OUT_PAD), jnp.float32).at[:, :OUT_FEATURES].set(b3)
    return w1_main, b1_left, b1_right, w2, b2, w3_pad, b3_pad


# --------------------------------------------------------------------------
# Wrappers
# --------------------------------------------------------------------------
def _pair_compare_pallas(left_emb, right_emb, params, *, block_b, compute_dtype):
    B, D = left_emb.shape
    w1, b1l, b1r, w2, b2, w3, b3 = _prepare_kernel_params(params, compute_dtype)
    H = w1.shape[1]
    HH = w2.shape[1]

    # Batch tile: multiple of 8 sublanes, capped by block_b, pad batch to fit.
    tb = min(_round_up(block_b, 8), _round_up(B, 8))
    bp = _round_up(B, tb)

    left = left_emb.astype(compute_dtype)
    right = right_emb.astype(compute_dtype)
    if bp != B:
        pad = ((0, bp - B), (0, 0))
        left = jnp.pad(left, pad)
        right = jnp.pad(right, pad)

    grid = (bp // tb,)
    row_spec = pl.BlockSpec((tb, D), lambda i: (i, 0))
    out_spec = pl.BlockSpec((tb, OUT_PAD), lambda i: (i, 0))

    def const_spec(arr):
        return pl.BlockSpec(arr.shape, lambda i: (0, 0))

    itemsize = jnp.dtype(compute_dtype).itemsize
    cost = pl.CostEstimate(
        flops=2 * bp * (2 * D * H + H * HH + HH * OUT_PAD),
        transcendentals=0,
        bytes_accessed=2 * bp * D * itemsize + bp * OUT_PAD * 4,
    )

    out = pl.pallas_call(
        pair_compare_kernel,
        out_shape=jax.ShapeDtypeStruct((bp, OUT_PAD), jnp.float32),
        grid=grid,
        in_specs=[row_spec, row_spec,
                  const_spec(w1), const_spec(b1l), const_spec(b1r),
                  const_spec(w2), const_spec(b2),
                  const_spec(w3), const_spec(b3)],
        out_specs=out_spec,
        compiler_params=pltpu.CompilerParams(
            dimension_semantics=("parallel",)),
        cost_estimate=cost,
    )(left, right, w1, b1l, b1r, w2, b2, w3, b3)

    return out[:B, :OUT_FEATURES]


def reference_forward(left_emb, right_emb, left_steps, right_steps, params):
    """Pure-jnp reference mirroring the PyTorch forward exactly."""
    left_steps = left_steps.astype(jnp.float32)
    right_steps = right_steps.astype(jnp.float32)
    left = jnp.concatenate([left_emb.astype(jnp.float32),
                            jnp.zeros_like(left_steps)], axis=-1)
    right = jnp.concatenate([right_emb.astype(jnp.float32),
                             jnp.ones_like(right_steps)], axis=-1)
    hid_left = _leaky_relu(left @ params["w1"] + params["b1"])
    hid_right = _leaky_relu(right @ params["w1"] + params["b1"])
    out = hid_left - hid_right
    out = _leaky_relu(out @ params["w2"] + params["b2"])
    return out @ params["w3"] + params["b3"]


def pair_compare_forward(left_emb, right_emb, left_steps, right_steps, params,
                         *, block_b=1024, compute_dtype=jnp.float32,
                         use_pallas=None):
    """PairCompare.forward given precomputed plan embeddings.

    `steps` only determine the shape of the appended 0/1 position column; that
    column is folded into the layer-1 biases inside the Pallas path.
    """
    B = left_emb.shape[0]
    if use_pallas is None:
        # Tiny batches: launch/DMA overhead dominates, let XLA fuse it.
        use_pallas = B >= 1024
    if not use_pallas:
        return reference_forward(left_emb, right_emb, left_steps, right_steps,
                                 params)
    return _pair_compare_pallas(left_emb, right_emb, params,
                                block_b=block_b, compute_dtype=compute_dtype)


# --------------------------------------------------------------------------
# Demo / correctness check
# --------------------------------------------------------------------------
if __name__ == "__main__":
    # Small shapes consistent with the module:
    #   batch=8, PlanNetwork.hidden_dim=32 (=> in_feature), hid_units=32.
    B = 8
    HIDDEN_DIM = 32
    HID_UNITS = 32

    key = jax.random.PRNGKey(0)
    k_l, k_r, k_sl, k_sr, k_p = jax.random.split(key, 5)

    left_emb = jax.random.normal(k_l, (B, HIDDEN_DIM), jnp.float32)
    right_emb = jax.random.normal(k_r, (B, HIDDEN_DIM), jnp.float32)
    left_steps = jax.random.randint(k_sl, (B, 1), 1, 10).astype(jnp.float32)
    right_steps = jax.random.randint(k_sr, (B, 1), 1, 10).astype(jnp.float32)

    params = init_pair_compare_params(k_p, HIDDEN_DIM, HID_UNITS)
    ref = reference_forward(left_emb, right_emb, left_steps, right_steps, params)

    # 1) f32 Pallas path (force it even at small B to exercise the kernel).
    out = pair_compare_forward(left_emb, right_emb, left_steps, right_steps,
                               params, use_pallas=True)
    out = jax.block_until_ready(out)
    assert out.shape == (B, OUT_FEATURES), out.shape
    assert jnp.allclose(out, ref, atol=1e-5, rtol=1e-5), "f32 mismatch vs reference"

    # 2) Multi-tile grid + batch padding path (B not a multiple of the tile).
    B2 = 40
    k_l2, k_r2 = jax.random.split(jax.random.PRNGKey(1), 2)
    left2 = jax.random.normal(k_l2, (B2, HIDDEN_DIM), jnp.float32)
    right2 = jax.random.normal(k_r2, (B2, HIDDEN_DIM), jnp.float32)
    steps2 = jnp.ones((B2, 1), jnp.float32)
    ref2 = reference_forward(left2, right2, steps2, steps2, params)
    out2 = pair_compare_forward(left2, right2, steps2, steps2, params,
                                use_pallas=True, block_b=16)
    out2 = jax.block_until_ready(out2)
    assert out2.shape == (B2, OUT_FEATURES), out2.shape
    assert jnp.allclose(out2, ref2, atol=1e-5, rtol=1e-5), "tiled f32 mismatch"

    # 3) bf16 input/weight path (f32 accumulation) — looser tolerance.
    out_bf16 = pair_compare_forward(left_emb, right_emb, left_steps, right_steps,
                                    params, use_pallas=True,
                                    compute_dtype=jnp.bfloat16)
    out_bf16 = jax.block_until_ready(out_bf16)
    assert out_bf16.shape == (B, OUT_FEATURES), out_bf16.shape
    assert jnp.allclose(out_bf16, ref, atol=1e-1, rtol=1e-1), "bf16 mismatch"

    print("KERNEL_OK")
</pallas_src>

<mosaic_0001>
module attributes {stable_mosaic.version = 11 : i64} {
  func.func @pair_compare_kernel(%arg0: i32, %arg1: memref<8x32xf32, #tpu.memory_space<vmem>>, %arg2: memref<8x32xf32, #tpu.memory_space<vmem>>, %arg3: memref<32x32xf32, #tpu.memory_space<vmem>>, %arg4: memref<1x32xf32, #tpu.memory_space<vmem>>, %arg5: memref<1x32xf32, #tpu.memory_space<vmem>>, %arg6: memref<32x16xf32, #tpu.memory_space<vmem>>, %arg7: memref<1x16xf32, #tpu.memory_space<vmem>>, %arg8: memref<16x128xf32, #tpu.memory_space<vmem>>, %arg9: memref<1x128xf32, #tpu.memory_space<vmem>>, %arg10: memref<8x128xf32, #tpu.memory_space<vmem>>) attributes {dimension_semantics = [#tpu.dimension_semantics<parallel>], iteration_bounds = array<i64: 1>, scalar_prefetch = 0 : i64, scratch_operands = 0 : i64, tpu.core_type = #tpu.core_type<tc>, window_params = [{transform_indices = @transform_0, window_bounds = array<i64: 8, 32>}, {transform_indices = @transform_1, window_bounds = array<i64: 8, 32>}, {pipeline_mode = #tpu.pipeline_mode<synchronous>, transform_indices = @transform_2, window_bounds = array<i64: 32, 32>}, {pipeline_mode = #tpu.pipeline_mode<synchronous>, transform_indices = @transform_3, window_bounds = array<i64: 1, 32>}, {pipeline_mode = #tpu.pipeline_mode<synchronous>, transform_indices = @transform_4, window_bounds = array<i64: 1, 32>}, {pipeline_mode = #tpu.pipeline_mode<synchronous>, transform_indices = @transform_5, window_bounds = array<i64: 32, 16>}, {pipeline_mode = #tpu.pipeline_mode<synchronous>, transform_indices = @transform_6, window_bounds = array<i64: 1, 16>}, {pipeline_mode = #tpu.pipeline_mode<synchronous>, transform_indices = @transform_7, window_bounds = array<i64: 16, 128>}, {pipeline_mode = #tpu.pipeline_mode<synchronous>, transform_indices = @transform_8, window_bounds = array<i64: 1, 128>}, {transform_indices = @transform_9, window_bounds = array<i64: 8, 128>}]} {
    %c0 = arith.constant 0 : index
    %c0_0 = arith.constant 0 : index
    %0 = vector.load %arg1[%c0, %c0_0] : memref<8x32xf32, #tpu.memory_space<vmem>>, vector<8x32xf32>
    %c0_1 = arith.constant 0 : index
    %c0_2 = arith.constant 0 : index
    %1 = vector.load %arg2[%c0_1, %c0_2] : memref<8x32xf32, #tpu.memory_space<vmem>>, vector<8x32xf32>
    %2 = tpu.concatenate %0, %1 in 0 : vector<8x32xf32>, vector<8x32xf32> -> vector<16x32xf32>
    %c0_3 = arith.constant 0 : index
    %c0_4 = arith.constant 0 : index
    %3 = vector.load %arg3[%c0_3, %c0_4] : memref<32x32xf32, #tpu.memory_space<vmem>>, vector<32x32xf32>
    %cst = arith.constant dense<0.000000e+00> : vector<16x32xf32>
    %4 = tpu.matmul %2, %3, %cst {dimension_numbers = #tpu.dot_dimension_numbers<[1], [0], [0], [1], [0, 0, 1, 1], [], []>} : vector<16x32xf32>, vector<32x32xf32>, vector<16x32xf32> -> vector<16x32xf32>
    %5 = vector.extract_strided_slice %4 {offsets = [0, 0], sizes = [8, 32], strides = [1, 1]} : vector<16x32xf32> to vector<8x32xf32>
    %c0_5 = arith.constant 0 : index
    %c0_6 = arith.constant 0 : index
    %6 = vector.load %arg4[%c0_5, %c0_6] : memref<1x32xf32, #tpu.memory_space<vmem>>, vector<1x32xf32>
    %7 = vector.broadcast %6 : vector<1x32xf32> to vector<8x32xf32>
    %8 = arith.addf %5, %7 : vector<8x32xf32>
    %cst_7 = arith.constant 0.000000e+00 : f32
    %9 = vector.broadcast %cst_7 : f32 to vector<8x32xf32>
    %10 = arith.cmpf ogt, %8, %9 : vector<8x32xf32>
    %cst_8 = arith.constant 0.00999999977 : f32
    %11 = vector.broadcast %cst_8 : f32 to vector<8x32xf32>
    %12 = arith.mulf %11, %8 : vector<8x32xf32>
    %13 = arith.select %10, %8, %12 : vector<8x32xi1>, vector<8x32xf32>
    %14 = vector.extract_strided_slice %4 {offsets = [8, 0], sizes = [8, 32], strides = [1, 1]} : vector<16x32xf32> to vector<8x32xf32>
    %c0_9 = arith.constant 0 : index
    %c0_10 = arith.constant 0 : index
    %15 = vector.load %arg5[%c0_9, %c0_10] : memref<1x32xf32, #tpu.memory_space<vmem>>, vector<1x32xf32>
    %16 = vector.broadcast %15 : vector<1x32xf32> to vector<8x32xf32>
    %17 = arith.addf %14, %16 : vector<8x32xf32>
    %cst_11 = arith.constant 0.000000e+00 : f32
    %18 = vector.broadcast %cst_11 : f32 to vector<8x32xf32>
    %19 = arith.cmpf ogt, %17, %18 : vector<8x32xf32>
    %cst_12 = arith.constant 0.00999999977 : f32
    %20 = vector.broadcast %cst_12 : f32 to vector<8x32xf32>
    %21 = arith.mulf %20, %17 : vector<8x32xf32>
    %22 = arith.select %19, %17, %21 : vector<8x32xi1>, vector<8x32xf32>
    %23 = arith.subf %13, %22 : vector<8x32xf32>
    %c0_13 = arith.constant 0 : index
    %c0_14 = arith.constant 0 : index
    %24 = vector.load %arg6[%c0_13, %c0_14] : memref<32x16xf32, #tpu.memory_space<vmem>>, vector<32x16xf32>
    %cst_15 = arith.constant dense<0.000000e+00> : vector<8x16xf32>
    %25 = tpu.matmul %23, %24, %cst_15 {dimension_numbers = #tpu.dot_dimension_numbers<[1], [0], [0], [1], [0, 0, 1, 1], [], []>} : vector<8x32xf32>, vector<32x16xf32>, vector<8x16xf32> -> vector<8x16xf32>
    %c0_16 = arith.constant 0 : index
    %c0_17 = arith.constant 0 : index
    %26 = vector.load %arg7[%c0_16, %c0_17] : memref<1x16xf32, #tpu.memory_space<vmem>>, vector<1x16xf32>
    %27 = vector.broadcast %26 : vector<1x16xf32> to vector<8x16xf32>
    %28 = arith.addf %25, %27 : vector<8x16xf32>
    %cst_18 = arith.constant 0.000000e+00 : f32
    %29 = vector.broadcast %cst_18 : f32 to vector<8x16xf32>
    %30 = arith.cmpf ogt, %28, %29 : vector<8x16xf32>
    %cst_19 = arith.constant 0.00999999977 : f32
    %31 = vector.broadcast %cst_19 : f32 to vector<8x16xf32>
    %32 = arith.mulf %31, %28 : vector<8x16xf32>
    %33 = arith.select %30, %28, %32 : vector<8x16xi1>, vector<8x16xf32>
    %c0_20 = arith.constant 0 : index
    %c0_21 = arith.constant 0 : index
    %34 = vector.load %arg8[%c0_20, %c0_21] : memref<16x128xf32, #tpu.memory_space<vmem>>, vector<16x128xf32>
    %cst_22 = arith.constant dense<0.000000e+00> : vector<8x128xf32>
    %35 = tpu.matmul %33, %34, %cst_22 {dimension_numbers = #tpu.dot_dimension_numbers<[1], [0], [0], [1], [0, 0, 1, 1], [], []>} : vector<8x16xf32>, vector<16x128xf32>, vector<8x128xf32> -> vector<8x128xf32>
    %c0_23 = arith.constant 0 : index
    %c0_24 = arith.constant 0 : index
    %36 = vector.load %arg9[%c0_23, %c0_24] : memref<1x128xf32, #tpu.memory_space<vmem>>, vector<1x128xf32>
    %37 = vector.broadcast %36 : vector<1x128xf32> to vector<8x128xf32>
    %38 = arith.addf %35, %37 : vector<8x128xf32>
    %c0_25 = arith.constant 0 : index
    %c0_26 = arith.constant 0 : index
    %39 = vector.load %arg10[%c0_25, %c0_26] : memref<8x128xf32, #tpu.memory_space<vmem>>, vector<8x128xf32>
    tpu.vector_store %arg10[%c0_25, %c0_26], %38 {strides = array<i32>} : memref<8x128xf32, #tpu.memory_space<vmem>>, vector<8x128xf32>,
    return
  }
  func.func @transform_0(%arg0: i32) -> (i32, i32) {
    %c0_i32 = arith.constant 0 : i32
    %c0_i32_0 = arith.constant 0 : i32
    return %arg0, %c0_i32 : i32, i32
  }
  func.func @transform_1(%arg0: i32) -> (i32, i32) {
    %c0_i32 = arith.constant 0 : i32
    %c0_i32_0 = arith.constant 0 : i32
    return %arg0, %c0_i32 : i32, i32
  }
  func.func @transform_2(%arg0: i32) -> (i32, i32) {
    %c0_i32 = arith.constant 0 : i32
    %c0_i32_0 = arith.constant 0 : i32
    %c0_i32_1 = arith.constant 0 : i32
    return %c0_i32, %c0_i32_0 : i32, i32
  }
  func.func @transform_3(%arg0: i32) -> (i32, i32) {
    %c0_i32 = arith.constant 0 : i32
    %c0_i32_0 = arith.constant 0 : i32
    %c0_i32_1 = arith.constant 0 : i32
    return %c0_i32, %c0_i32_0 : i32, i32
  }
  func.func @transform_4(%arg0: i32) -> (i32, i32) {
    %c0_i32 = arith.constant 0 : i32
    %c0_i32_0 = arith.constant 0 : i32
    %c0_i32_1 = arith.constant 0 : i32
    return %c0_i32, %c0_i32_0 : i32, i32
  }
  func.func @transform_5(%arg0: i32) -> (i32, i32) {
    %c0_i32 = arith.constant 0 : i32
    %c0_i32_0 = arith.constant 0 : i32
    %c0_i32_1 = arith.constant 0 : i32
    return %c0_i32, %c0_i32_0 : i32, i32
  }
  func.func @transform_6(%arg0: i32) -> (i32, i32) {
    %c0_i32 = arith.constant 0 : i32
    %c0_i32_0 = arith.constant 0 : i32
    %c0_i32_1 = arith.constant 0 : i32
    return %c0_i32, %c0_i32_0 : i32, i32
  }
  func.func @transform_7(%arg0: i32) -> (i32, i32) {
    %c0_i32 = arith.constant 0 : i32
    %c0_i32_0 = arith.constant 0 : i32
    %c0_i32_1 = arith.constant 0 : i32
    return %c0_i32, %c0_i32_0 : i32, i32
  }
  func.func @transform_8(%arg0: i32) -> (i32, i32) {
    %c0_i32 = arith.constant 0 : i32
    %c0_i32_0 = arith.constant 0 : i32
    %c0_i32_1 = arith.constant 0 : i32
    return %c0_i32, %c0_i32_0 : i32, i32
  }
  func.func @transform_9(%arg0: i32) -> (i32, i32) {
    %c0_i32 = arith.constant 0 : i32
    %c0_i32_0 = arith.constant 0 : i32
    return %arg0, %c0_i32 : i32, i32
  }
}

</mosaic_0001>

<llo_original>
// kernel: tpu_custom_call.1
$region0: #{tpu_custom_call.1}
  #allocation0 [shape = 'u32[]', space=smem, size = 0x4, offset = 0x4, fixed_abs, tag = 'smem constant byte address 0x4 - core index']
  #allocation1 [shape = 'u32[144,128]{1,0:T(1,128)}', space=vmem, size = 0x12000, scoped, tag = 'internal scratch']
  %s0 = inlined_call_operand.hbm [shape: f32[8,32], index: 0, kind: input, shape index: {}]
  %s1 = inlined_call_operand.hbm [shape: f32[8,32], index: 1, kind: input, shape index: {}]
  %s2 = inlined_call_operand.vmem [shape: f32[32,32], index: 2, kind: input, shape index: {}]
  %s3 = inlined_call_operand.vmem [shape: f32[1,32], index: 3, kind: input, shape index: {}]
  %s4 = inlined_call_operand.vmem [shape: f32[1,32], index: 4, kind: input, shape index: {}]
  %s5 = inlined_call_operand.vmem [shape: f32[32,16], index: 5, kind: input, shape index: {}]
  %s6 = inlined_call_operand.vmem [shape: f32[1,16], index: 6, kind: input, shape index: {}]
  %s7 = inlined_call_operand.vmem [shape: f32[16,128], index: 7, kind: input, shape index: {}]
  %s8 = inlined_call_operand.vmem [shape: f32[1,128], index: 8, kind: input, shape index: {}]
  %s9 = inlined_call_operand.hbm [shape: f32[8,128], index: 9, kind: output, shape index: {}]
  %s10 = sld [smem:[#allocation0]]
  $region54: #{tpu_custom_call.1} parent=0
    _
  %s12 = ssub.s32 1, %s10
  %s13 = scalar_select 0, %s12, %s10
  $region1: #{tpu_custom_call.1} parent=0
    #allocation2 [shape = 'u8[4096]{0}', space=vmem, size = 0x1000, scoped, tag = 'input window, operand 0, single buffered']
    #allocation3 [shape = 's32[1]{0}', space=sflag, size = 0x4, scoped, tag = 'scoped memory for tpu_custom_call.1']
    #allocation4 [shape = 's32[1]{0}', space=sflag, size = 0x4, scoped, tag = 'scoped memory for tpu_custom_call.1']
    #allocation5 [shape = 'u8[4096]{0}', space=vmem, size = 0x1000, scoped, tag = 'input window, operand 1, single buffered']
    #allocation6 [shape = 's32[1]{0}', space=sflag, size = 0x4, scoped, tag = 'scoped memory for tpu_custom_call.1']
    #allocation7 [shape = 'u8[4096]{0}', space=vmem, size = 0x1000, scoped, tag = 'output window, operand 0, single buffered']
    %14 = vsyncpa [#allocation3], 0
    %15 = vsyncpa [#allocation6], 0
    %16 = vsyncpa [#allocation4], 0
    // Predicated region
    $region2: #{tpu_custom_call.1} parent=1 // pred_check
      _
    $region3: #{tpu_custom_call.1} parent=1 // pred_check_branch
      %18 = sbr.rel (0) target = $region5
    $region4: #{tpu_custom_call.1} parent=1 // pred_region
      %s20 = ssub.s32 128, 128
      %21 = vsyncadd [#allocation3], %s20
      %s23 = sshll.u32 [#allocation2], 4
      %s24 = int_to_ptr.vmem [resolvable:$true] %s23
      %26 = dma.hbm_to_vmem [thread:$0]  %s0, 128, %s24, [#allocation3]
    $region5: #{tpu_custom_call.1} parent=1 // pred_fallthru
      _
    // Predicated region
    $region6: #{tpu_custom_call.1} parent=1 // pred_check
      _
    $region7: #{tpu_custom_call.1} parent=1 // pred_check_branch
      %28 = sbr.rel (0) target = $region9
    $region8: #{tpu_custom_call.1} parent=1 // pred_region
      %s30 = ssub.s32 128, 128
      %31 = vsyncadd [#allocation6], %s30
      %s33 = sshll.u32 [#allocation5], 4
      %s34 = int_to_ptr.vmem [resolvable:$true] %s33
      %36 = dma.hbm_to_vmem [thread:$0]  %s1, 128, %s34, [#allocation6]
    $region9: #{tpu_custom_call.1} parent=1 // pred_fallthru
      _
    // Predicated region
    $region10: #{tpu_custom_call.1} parent=1 // pred_check
      _
    $region11: #{tpu_custom_call.1} parent=1 // pred_check_branch
      %38 = sbr.rel (0) target = $region13
    $region12: #{tpu_custom_call.1} parent=1 // pred_region
      _
    $region13: #{tpu_custom_call.1} parent=1 // pred_fallthru
      _
    // Predicated region
    $region14: #{tpu_custom_call.1} parent=1 // pred_check
      _
    $region15: #{tpu_custom_call.1} parent=1 // pred_check_branch
      %40 = sbr.rel (0) target = $region17
    $region16: #{tpu_custom_call.1} parent=1 // pred_region
      _
    $region17: #{tpu_custom_call.1} parent=1 // pred_fallthru
      _
    // Predicated region
    $region18: #{tpu_custom_call.1} parent=1 // pred_check
      _
    $region19: #{tpu_custom_call.1} parent=1 // pred_check_branch
      %42 = sbr.rel (0) target = $region21
    $region20: #{tpu_custom_call.1} parent=1 // pred_region
      _
    $region21: #{tpu_custom_call.1} parent=1 // pred_fallthru
      _
    // Predicated region
    $region22: #{tpu_custom_call.1} parent=1 // pred_check
      _
    $region23: #{tpu_custom_call.1} parent=1 // pred_check_branch
      %44 = sbr.rel (0) target = $region25
    $region24: #{tpu_custom_call.1} parent=1 // pred_region
      _
    $region25: #{tpu_custom_call.1} parent=1 // pred_fallthru
      _
    // Predicated region
    $region26: #{tpu_custom_call.1} parent=1 // pred_check
      _
    $region27: #{tpu_custom_call.1} parent=1 // pred_check_branch
      %46 = sbr.rel (0) target = $region29
    $region28: #{tpu_custom_call.1} parent=1 // pred_region
      _
    $region29: #{tpu_custom_call.1} parent=1 // pred_fallthru
      _
    // Predicated region
    $region30: #{tpu_custom_call.1} parent=1 // pred_check
      _
    $region31: #{tpu_custom_call.1} parent=1 // pred_check_branch
      %48 = sbr.rel (0) target = $region33
    $region32: #{tpu_custom_call.1} parent=1 // pred_region
      _
    $region33: #{tpu_custom_call.1} parent=1 // pred_fallthru
      _
    // Predicated region
    $region34: #{tpu_custom_call.1} parent=1 // pred_check
      _
    $region35: #{tpu_custom_call.1} parent=1 // pred_check_branch
      %50 = sbr.rel (0) target = $region37
    $region36: #{tpu_custom_call.1} parent=1 // pred_region
      _
    $region37: #{tpu_custom_call.1} parent=1 // pred_fallthru
      _
    // Predicated region
    $region38: #{tpu_custom_call.1} parent=1 // pred_check
      _
    $region39: #{tpu_custom_call.1} parent=1 // pred_check_branch
      %52 = sbr.rel (0) target = $region41
    $region40: #{tpu_custom_call.1} parent=1 // pred_region
      %53 = dma.done [#allocation3], 128
    $region41: #{tpu_custom_call.1} parent=1 // pred_fallthru
      _
    // Predicated region
    $region42: #{tpu_custom_call.1} parent=1 // pred_check
      _
    $region43: #{tpu_custom_call.1} parent=1 // pred_check_branch
      %55 = sbr.rel (0) target = $region45
    $region44: #{tpu_custom_call.1} parent=1 // pred_region
      %56 = dma.done [#allocation6], 128
    $region45: #{tpu_custom_call.1} parent=1 // pred_fallthru
      _
    %v57 = vld [vmem:[#allocation2] sm:$0xff]
    %v58 = vld [vmem:[#allocation5] sm:$0xff]
    %v59 = vld [vmem:[%s2] sm:$0xff]
    %v60 = vld [vmem:[%s2 + $0x8] sm:$0xff]
    %v61 = vld [vmem:[%s2 + $0x10] sm:$0xff]
    %v62 = vld [vmem:[%s2 + $0x18] sm:$0xff]
    %vm63 = vcmask 261120
    %v65 = vsel %vm63, %v57, 0
    %v68 = vsel %vm63, %v58, 0
    %70 = vmatprep.subr.mxu0 0.0
    %71 = vmatpush1.msra.mxu0 %v59
    %72 = vmatprep.subr.mxu0 0.0
    %73 = vmatpush1.msra.mxu0 %v60
    %74 = vmatprep.subr.mxu0 0.0
    %75 = vmatpush1.msra.mxu0 %v61
    %76 = vmatprep.subr.mxu0 0.0
    %77 = vmatpush1.msra.mxu0 %v62
    %78 = vmatprep.subr.mxu0 0.0
    %79 = vmatpush1.msra.mxu0 0.0
    %80 = vmatprep.subr.mxu0 0.0
    %81 = vmatpush1.msra.mxu0 0.0
    %82 = vmatprep.subr.mxu0 0.0
    %83 = vmatpush1.msra.mxu0 0.0
    %84 = vmatprep.subr.mxu0 0.0
    %85 = vmatpush1.msra.mxu0 0.0
    %86 = vmatprep.subr.mxu0 0.0
    %87 = vmatpush1.msra.mxu0 0.0
    %88 = vmatprep.subr.mxu0 0.0
    %89 = vmatpush1.msra.mxu0 0.0
    %90 = vmatprep.subr.mxu0 0.0
    %91 = vmatpush1.msra.mxu0 0.0
    %92 = vmatprep.subr.mxu0 0.0
    %93 = vmatpush1.msra.mxu0 0.0
    %94 = vmatprep.subr.mxu0 0.0
    %95 = vmatpush1.msra.mxu0 0.0
    %96 = vmatprep.subr.mxu0 0.0
    %97 = vmatpush1.msra.mxu0 0.0
    %98 = vmatprep.subr.mxu0 0.0
    %99 = vmatpush1.msra.mxu0 0.0
    %100 = vmatprep.subr.mxu0 0.0
    %101 = vmatpush1.msra.mxu0 0.0
    %102 = vmatprep.subr.mxu0 0.0
    %103 = vmatpush1.msra.mxu0 0.0
    %104 = vmatprep.subr.mxu0 0.0
    %105 = vmatpush1.msra.mxu0 0.0
    %106 = vmatprep.subr.mxu0 0.0
    %107 = vmatpush1.msra.mxu0 0.0
    %108 = vmatprep.subr.mxu0 0.0
    %109 = vmatpush1.msra.mxu0 0.0
    %110 = vmatprep.subr.mxu0 0.0
    %111 = vmatpush1.msra.mxu0 0.0
    %112 = vmatprep.subr.mxu0 0.0
    %113 = vmatpush1.msra.mxu0 0.0
    %114 = vmatprep.subr.mxu0 0.0
    %115 = vmatpush1.msra.mxu0 0.0
    %116 = vmatprep.subr.mxu0 0.0
    %117 = vmatpush1.msra.mxu0 0.0
    %118 = vmatprep.subr.mxu0 0.0
    %119 = vmatpush1.msra.mxu0 0.0
    %120 = vmatprep.subr.mxu0 0.0
    %121 = vmatpush1.msra.mxu0 0.0
    %122 = vmatprep.subr.mxu0 0.0
    %123 = vmatpush1.msra.mxu0 0.0
    %124 = vmatprep.subr.mxu0 0.0
    %125 = vmatpush1.msra.mxu0 0.0
    %126 = vmatprep.subr.mxu0 0.0
    %127 = vmatpush1.msra.mxu0 0.0
    %128 = vmatprep.subr.mxu0 0.0
    %129 = vmatpush1.msra.mxu0 0.0
    %130 = vmatprep.subr.mxu0 0.0
    %131 = vmatpush1.msra.mxu0 0.0
    %132 = vmatprep.subr.mxu0 0.0
    %133 = vmatpush1.msra.mxu0 0.0
    %134 = vmatprep.mubr.f32.mxu0 0.0
    %135 = vmatmul.mubr.f32.gmra.mrb[0].mxu0 %v65
    %v136 = vpop.f32.mrb[0].mxu0
    %v137 = vadd.f32 0.0, %v136
    %v138 = vpop.f32.mrb[0].mxu0
    %139 = vmatprep.mubr.f32.mxu0 0.0
    %140 = vmatmul.mubr.f32.gmra.mrb[0].mxu0 %v68
    %v141 = vpop.f32.mrb[0].mxu0
    %v142 = vadd.f32 0.0, %v141
    %v143 = vpop.f32.mrb[0].mxu0
    %144 = vdwg.mxu0
    %v145 = vld [vmem:[%s3] sm:$0x1]
    %v147 = vlaneseq
    %v148 = vshrl.u32 %v147, 7
    %v149 = vsub.s32 0, %v148
    %v150 = vrot.slane %v145, %v149
    %v152 = vadd.f32 %v137, %v150
    %vm153 = vcmp.gt.f32.partialorder %v152, 0.0
    %v154 = vmul.f32 %v152, 0.01
    %v155 = vsel %vm153, %v152, %v154
    %v156 = vld [vmem:[%s4] sm:$0x1]
    %v158 = vlaneseq
    %v159 = vshrl.u32 %v158, 7
    %v160 = vsub.s32 0, %v159
    %v161 = vrot.slane %v156, %v160
    %v163 = vadd.f32 %v142, %v161
    %vm164 = vcmp.gt.f32.partialorder %v163, 0.0
    %v165 = vmul.f32 %v163, 0.01
    %v166 = vsel %vm164, %v163, %v165
    %v167 = vsub.f32 %v155, %v166
    %v168 = vld [vmem:[%s5] sm:$0xff]
    %v169 = vld [vmem:[%s5 + $0x8] sm:$0xff]
    %v170 = vld [vmem:[%s5 + $0x10] sm:$0xff]
    %v171 = vld [vmem:[%s5 + $0x18] sm:$0xff]
    %v172 = vld [vmem:[%s6] sm:$0x1]
    %v174 = vlaneseq
    %v175 = vshrl.u32 %v174, 7
    %v176 = vsub.s32 0, %v175
    %v177 = vrot.slane %v172, %v176
    %v180 = vsel %vm63, %v167, 0
    %182 = vmatprep.subr.mxu0 0.0
    %183 = vmatpush1.msra.mxu0 %v168
    %184 = vmatprep.subr.mxu0 0.0
    %185 = vmatpush1.msra.mxu0 %v169
    %186 = vmatprep.subr.mxu0 0.0
    %187 = vmatpush1.msra.mxu0 %v170
    %188 = vmatprep.subr.mxu0 0.0
    %189 = vmatpush1.msra.mxu0 %v171
    %190 = vmatprep.subr.mxu0 0.0
    %191 = vmatpush1.msra.mxu0 0.0
    %192 = vmatprep.subr.mxu0 0.0
    %193 = vmatpush1.msra.mxu0 0.0
    %194 = vmatprep.subr.mxu0 0.0
    %195 = vmatpush1.msra.mxu0 0.0
    %196 = vmatprep.subr.mxu0 0.0
    %197 = vmatpush1.msra.mxu0 0.0
    %198 = vmatprep.subr.mxu0 0.0
    %199 = vmatpush1.msra.mxu0 0.0
    %200 = vmatprep.subr.mxu0 0.0
    %201 = vmatpush1.msra.mxu0 0.0
    %202 = vmatprep.subr.mxu0 0.0
    %203 = vmatpush1.msra.mxu0 0.0
    %204 = vmatprep.subr.mxu0 0.0
    %205 = vmatpush1.msra.mxu0 0.0
    %206 = vmatprep.subr.mxu0 0.0
    %207 = vmatpush1.msra.mxu0 0.0
    %208 = vmatprep.subr.mxu0 0.0
    %209 = vmatpush1.msra.mxu0 0.0
    %210 = vmatprep.subr.mxu0 0.0
    %211 = vmatpush1.msra.mxu0 0.0
    %212 = vmatprep.subr.mxu0 0.0
    %213 = vmatpush1.msra.mxu0 0.0
    %214 = vmatprep.subr.mxu0 0.0
    %215 = vmatpush1.msra.mxu0 0.0
    %216 = vmatprep.subr.mxu0 0.0
    %217 = vmatpush1.msra.mxu0 0.0
    %218 = vmatprep.subr.mxu0 0.0
    %219 = vmatpush1.msra.mxu0 0.0
    %220 = vmatprep.subr.mxu0 0.0
    %221 = vmatpush1.msra.mxu0 0.0
    %222 = vmatprep.subr.mxu0 0.0
    %223 = vmatpush1.msra.mxu0 0.0
    %224 = vmatprep.subr.mxu0 0.0
    %225 = vmatpush1.msra.mxu0 0.0
    %226 = vmatprep.subr.mxu0 0.0
    %227 = vmatpush1.msra.mxu0 0.0
    %228 = vmatprep.subr.mxu0 0.0
    %229 = vmatpush1.msra.mxu0 0.0
    %230 = vmatprep.subr.mxu0 0.0
    %231 = vmatpush1.msra.mxu0 0.0
    %232 = vmatprep.subr.mxu0 0.0
    %233 = vmatpush1.msra.mxu0 0.0
    %234 = vmatprep.subr.mxu0 0.0
    %235 = vmatpush1.msra.mxu0 0.0
    %236 = vmatprep.subr.mxu0 0.0
    %237 = vmatpush1.msra.mxu0 0.0
    %238 = vmatprep.subr.mxu0 0.0
    %239 = vmatpush1.msra.mxu0 0.0
    %240 = vmatprep.subr.mxu0 0.0
    %241 = vmatpush1.msra.mxu0 0.0
    %242 = vmatprep.subr.mxu0 0.0
    %243 = vmatpush1.msra.mxu0 0.0
    %244 = vmatprep.subr.mxu0 0.0
    %245 = vmatpush1.msra.mxu0 0.0
    %246 = vmatprep.mubr.f32.mxu0 0.0
    %247 = vmatmul.mubr.f32.gmra.mrb[0].mxu0 %v180
    %v248 = vpop.f32.mrb[0].mxu0
    %v249 = vadd.f32 %v177, %v248
    %v250 = vpop.f32.mrb[0].mxu0
    %251 = vdwg.mxu0
    %vm252 = vcmp.gt.f32.partialorder %v249, 0.0
    %v253 = vmul.f32 %v249, 0.01
    %v254 = vsel %vm252, %v249, %v253
    %v255 = vld [vmem:[%s7] sm:$0xff]
    %v256 = vld [vmem:[%s7 + $0x8] sm:$0xff]
    %v257 = vld [vmem:[%s8] sm:$0x1]
    %v259 = vlaneseq
    %v260 = vshrl.u32 %v259, 7
    %v261 = vsub.s32 0, %v260
    %v262 = vrot.slane %v257, %v261
    %vm264 = vcmask 130048
    %v266 = vsel %vm264, %v254, 0
    %268 = vmatprep.subr.mxu0 0.0
    %269 = vmatpush1.msra.mxu0 %v255
    %270 = vmatprep.subr.mxu0 0.0
    %271 = vmatpush1.msra.mxu0 %v256
    %272 = vmatprep.subr.mxu0 0.0
    %273 = vmatpush1.msra.mxu0 0.0
    %274 = vmatprep.subr.mxu0 0.0
    %275 = vmatpush1.msra.mxu0 0.0
    %276 = vmatprep.subr.mxu0 0.0
    %277 = vmatpush1.msra.mxu0 0.0
    %278 = vmatprep.subr.mxu0 0.0
    %279 = vmatpush1.msra.mxu0 0.0
    %280 = vmatprep.subr.mxu0 0.0
    %281 = vmatpush1.msra.mxu0 0.0
    %282 = vmatprep.subr.mxu0 0.0
    %283 = vmatpush1.msra.mxu0 0.0
    %284 = vmatprep.subr.mxu0 0.0
    %285 = vmatpush1.msra.mxu0 0.0
    %286 = vmatprep.subr.mxu0 0.0
    %287 = vmatpush1.msra.mxu0 0.0
    %288 = vmatprep.subr.mxu0 0.0
    %289 = vmatpush1.msra.mxu0 0.0
    %290 = vmatprep.subr.mxu0 0.0
    %291 = vmatpush1.msra.mxu0 0.0
    %292 = vmatprep.subr.mxu0 0.0
    %293 = vmatpush1.msra.mxu0 0.0
    %294 = vmatprep.subr.mxu0 0.0
    %295 = vmatpush1.msra.mxu0 0.0
    %296 = vmatprep.subr.mxu0 0.0
    %297 = vmatpush1.msra.mxu0 0.0
    %298 = vmatprep.subr.mxu0 0.0
    %299 = vmatpush1.msra.mxu0 0.0
    %300 = vmatprep.subr.mxu0 0.0
    %301 = vmatpush1.msra.mxu0 0.0
    %302 = vmatprep.subr.mxu0 0.0
    %303 = vmatpush1.msra.mxu0 0.0
    %304 = vmatprep.subr.mxu0 0.0
    %305 = vmatpush1.msra.mxu0 0.0
    %306 = vmatprep.subr.mxu0 0.0
    %307 = vmatpush1.msra.mxu0 0.0
    %308 = vmatprep.subr.mxu0 0.0
    %309 = vmatpush1.msra.mxu0 0.0
    %310 = vmatprep.subr.mxu0 0.0
    %311 = vmatpush1.msra.mxu0 0.0
    %312 = vmatprep.subr.mxu0 0.0
    %313 = vmatpush1.msra.mxu0 0.0
    %314 = vmatprep.subr.mxu0 0.0
    %315 = vmatpush1.msra.mxu0 0.0
    %316 = vmatprep.subr.mxu0 0.0
    %317 = vmatpush1.msra.mxu0 0.0
    %318 = vmatprep.subr.mxu0 0.0
    %319 = vmatpush1.msra.mxu0 0.0
    %320 = vmatprep.subr.mxu0 0.0
    %321 = vmatpush1.msra.mxu0 0.0
    %322 = vmatprep.subr.mxu0 0.0
    %323 = vmatpush1.msra.mxu0 0.0
    %324 = vmatprep.subr.mxu0 0.0
    %325 = vmatpush1.msra.mxu0 0.0
    %326 = vmatprep.subr.mxu0 0.0
    %327 = vmatpush1.msra.mxu0 0.0
    %328 = vmatprep.subr.mxu0 0.0
    %329 = vmatpush1.msra.mxu0 0.0
    %330 = vmatprep.subr.mxu0 0.0
    %331 = vmatpush1.msra.mxu0 0.0
    %332 = vmatprep.mubr.f32.mxu0 0.0
    %333 = vmatmul.mubr.f32.gmra.mrb[0].mxu0 %v266
    %v334 = vpop.f32.mrb[0].mxu0
    %v335 = vadd.f32 %v262, %v334
    %v336 = vpop.f32.mrb[0].mxu0
    %337 = vdwg.mxu0
    %338 = vst [vmem:[#allocation7] sm:$0xff] %v335
    // Predicated region
    $region46: #{tpu_custom_call.1} parent=1 // pred_check
      _
    $region47: #{tpu_custom_call.1} parent=1 // pred_check_branch
      %340 = sbr.rel (0) target = $region49
    $region48: #{tpu_custom_call.1} parent=1 // pred_region
      %s342 = ssub.s32 128, 128
      %343 = vsyncadd [#allocation4], %s342
      %s345 = sshll.u32 [#allocation7], 4
      %s346 = int_to_ptr.vmem [resolvable:$true] %s345
      %348 = dma.vmem_to_hbm [thread:$0]  %s346, 128, %s9, [#allocation4]
    $region49: #{tpu_custom_call.1} parent=1 // pred_fallthru
      _
    // Predicated region
    $region50: #{tpu_custom_call.1} parent=1 // pred_check
      _
    $region51: #{tpu_custom_call.1} parent=1 // pred_check_branch
      %350 = sbr.rel (0) target = $region53
    $region52: #{tpu_custom_call.1} parent=1 // pred_region
      %351 = dma.done [#allocation4], 128
    $region53: #{tpu_custom_call.1} parent=1 // pred_fallthru
      _
    %352 = vsyncpa [#allocation3], 1
    %353 = vsyncpa [#allocation6], 1
    %354 = vsyncpa [#allocation4], 1

</llo_original>
